<compile_context>
chip_gen: v5e
topology: v5e:2x2
jax: 0.10.0
libtpu: 0.0.40
codegen_flags: <defaults>
</compile_context>

<pallas_src>
import jax
import jax.numpy as jnp
from jax.experimental import pallas as pl
from jax.experimental.pallas import tpu as pltpu


def _round_up(x, m):
    return ((x + m - 1) // m) * m


def signnet_kernel(pe_ref, w1_ref, b1_ref, w2_ref, b2x2_ref, out_ref):
    """One row-tile of SignNet: (relu(u+b1) + relu(b1-u)) @ W2 + 2*b2."""
    pe = pe_ref[...].astype(w1_ref.dtype)
    u = jnp.dot(pe, w1_ref[...], preferred_element_type=jnp.float32)
    b1 = b1_ref[...]                      # (1, hidden): sublane-broadcast add
    h = jnp.maximum(u + b1, 0.0) + jnp.maximum(b1 - u, 0.0)
    y = jnp.dot(h.astype(w2_ref.dtype), w2_ref[...],
                preferred_element_type=jnp.float32) + b2x2_ref[...]
    out_ref[...] = y.astype(out_ref.dtype)


def signnet_forward(pe, w1, b1, w2, b2, *, tile_n=4096,
                    compute_dtype=jnp.bfloat16):
    """pe: [N, in_dim]; w1: [in_dim, hidden]; b1: [hidden]; w2: [hidden, out];
    b2: [out].  Returns [N, out] = MLP(pe) + MLP(-pe)."""
    n, in_dim = pe.shape
    hidden_dim = w1.shape[1]
    out_dim = w2.shape[1]

    # Matmul operands in the MXU compute dtype (bf16 by default); biases stay
    # f32 and are added to the f32 accumulator.
    w1c = w1.astype(compute_dtype)
    w2c = w2.astype(compute_dtype)
    b1r = b1.reshape(1, hidden_dim).astype(jnp.float32)
    b2x2 = (2.0 * b2).reshape(1, out_dim).astype(jnp.float32)  # bias of both branches

    # Row tiling: keep the sublane dim a multiple of 8, and clamp so the grid
    # has >= 2 steps when possible (v7x megacore).  Ragged tails rely on
    # Pallas partial-block write masking; no wrapper pad/slice HBM passes.
    tile_n = max(8, min(tile_n, _round_up(pl.cdiv(n, 2), 8)))
    tile_n = _round_up(tile_n, 8)
    grid = (pl.cdiv(n, tile_n),)

    cost = pl.CostEstimate(
        flops=2 * n * (in_dim * hidden_dim + hidden_dim * out_dim),
        transcendentals=0,
        bytes_accessed=4 * n * (in_dim + out_dim)
        + 2 * (in_dim * hidden_dim + hidden_dim * out_dim)
        + 4 * (hidden_dim + out_dim),
    )

    out = pl.pallas_call(
        signnet_kernel,
        out_shape=jax.ShapeDtypeStruct((n, out_dim), jnp.float32),
        grid=grid,
        in_specs=[
            pl.BlockSpec((tile_n, in_dim), lambda i: (i, 0)),       # pe row tile
            pl.BlockSpec((in_dim, hidden_dim), lambda i: (0, 0)),   # W1 (resident)
            pl.BlockSpec((1, hidden_dim), lambda i: (0, 0)),        # b1
            pl.BlockSpec((hidden_dim, out_dim), lambda i: (0, 0)),  # W2 (resident)
            pl.BlockSpec((1, out_dim), lambda i: (0, 0)),           # 2*b2
        ],
        out_specs=pl.BlockSpec((tile_n, out_dim), lambda i: (i, 0)),
        compiler_params=pltpu.CompilerParams(
            dimension_semantics=("parallel",),
            # Headroom for tile_n=4096 double-buffered tiles on v5e's smaller
            # default scoped VMEM; well under physical VMEM on all gens.
            vmem_limit_bytes=32 * 1024 * 1024,
        ),
        cost_estimate=cost,
    )(pe, w1c, b1r, w2c, b2x2)

    return out


def signnet_reference(pe, w1, b1, w2, b2):
    def mlp(x):
        h = jnp.maximum(x @ w1 + b1, 0.0)
        return h @ w2 + b2

    return mlp(pe) + mlp(-pe)


if __name__ == "__main__":
    # Shapes implied by the module: pe_dim=10 per node, hidden_dim=64,
    # out_dim small (task/embedding dim).
    in_dim = 10
    hidden_dim = 64
    out_dim = 32

    key = jax.random.PRNGKey(0)
    k_pe, k_w1, k_b1, k_w2, k_b2, k_pe2 = jax.random.split(key, 6)

    # nn.Linear-style Kaiming-uniform bounds, deterministic.
    bound1 = 1.0 / jnp.sqrt(in_dim)
    w1 = jax.random.uniform(k_w1, (in_dim, hidden_dim), jnp.float32, -bound1, bound1)
    b1 = jax.random.uniform(k_b1, (hidden_dim,), jnp.float32, -bound1, bound1)

    bound2 = 1.0 / jnp.sqrt(hidden_dim)
    w2 = jax.random.uniform(k_w2, (hidden_dim, out_dim), jnp.float32, -bound2, bound2)
    b2 = jax.random.uniform(k_b2, (out_dim,), jnp.float32, -bound2, bound2)

    # Small case (two tiny tiles), f32 compute -> strict tolerance.
    num_nodes = 16
    pe = jax.random.normal(k_pe, (num_nodes, in_dim), dtype=jnp.float32)
    out = jax.block_until_ready(
        signnet_forward(pe, w1, b1, w2, b2, compute_dtype=jnp.float32))
    ref = signnet_reference(pe, w1, b1, w2, b2)
    assert out.shape == (num_nodes, out_dim)
    assert jnp.allclose(out, ref, atol=1e-4, rtol=1e-4)

    # Larger, non-multiple-of-tile case: exercises multi-tile grid + masked
    # ragged-tail writes (1000 % 256 != 0), f32 compute.
    num_nodes2 = 1000
    pe2 = jax.random.normal(k_pe2, (num_nodes2, in_dim), dtype=jnp.float32)
    out2 = jax.block_until_ready(
        signnet_forward(pe2, w1, b1, w2, b2, tile_n=256,
                        compute_dtype=jnp.float32))
    ref2 = signnet_reference(pe2, w1, b1, w2, b2)
    assert out2.shape == (num_nodes2, out_dim)
    assert jnp.allclose(out2, ref2, atol=1e-4, rtol=1e-4)

    # Default fast path: bf16 MXU operands, f32 accumulation.  Looser
    # tolerance reflects bf16 operand rounding only (accumulation stays f32).
    out3 = jax.block_until_ready(signnet_forward(pe2, w1, b1, w2, b2))
    assert out3.shape == (num_nodes2, out_dim)
    assert jnp.allclose(out3, ref2, atol=3e-2, rtol=3e-2)

    print("KERNEL_OK")
</pallas_src>

<mosaic_0001>
module attributes {stable_mosaic.version = 11 : i64} {
  func.func @signnet_kernel(%arg0: i32, %arg1: memref<8x10xf32, #tpu.memory_space<vmem>>, %arg2: memref<10x64xf32, #tpu.memory_space<vmem>>, %arg3: memref<1x64xf32, #tpu.memory_space<vmem>>, %arg4: memref<64x32xf32, #tpu.memory_space<vmem>>, %arg5: memref<1x32xf32, #tpu.memory_space<vmem>>, %arg6: memref<8x32xf32, #tpu.memory_space<vmem>>) attributes {dimension_semantics = [#tpu.dimension_semantics<parallel>], iteration_bounds = array<i64: 2>, scalar_prefetch = 0 : i64, scratch_operands = 0 : i64, tpu.core_type = #tpu.core_type<tc>, window_params = [{transform_indices = @transform_0, window_bounds = array<i64: 8, 10>}, {pipeline_mode = #tpu.pipeline_mode<synchronous>, transform_indices = @transform_1, window_bounds = array<i64: 10, 64>}, {pipeline_mode = #tpu.pipeline_mode<synchronous>, transform_indices = @transform_2, window_bounds = array<i64: 1, 64>}, {pipeline_mode = #tpu.pipeline_mode<synchronous>, transform_indices = @transform_3, window_bounds = array<i64: 64, 32>}, {pipeline_mode = #tpu.pipeline_mode<synchronous>, transform_indices = @transform_4, window_bounds = array<i64: 1, 32>}, {transform_indices = @transform_5, window_bounds = array<i64: 8, 32>}]} {
    %c0 = arith.constant 0 : index
    %c0_0 = arith.constant 0 : index
    %0 = vector.load %arg1[%c0, %c0_0] : memref<8x10xf32, #tpu.memory_space<vmem>>, vector<8x10xf32>
    %c0_1 = arith.constant 0 : index
    %c0_2 = arith.constant 0 : index
    %1 = vector.load %arg2[%c0_1, %c0_2] : memref<10x64xf32, #tpu.memory_space<vmem>>, vector<10x64xf32>
    %cst = arith.constant dense<0.000000e+00> : vector<8x64xf32>
    %2 = tpu.matmul %0, %1, %cst {dimension_numbers = #tpu.dot_dimension_numbers<[1], [0], [0], [1], [0, 0, 1, 1], [], []>} : vector<8x10xf32>, vector<10x64xf32>, vector<8x64xf32> -> vector<8x64xf32>
    %c0_3 = arith.constant 0 : index
    %c0_4 = arith.constant 0 : index
    %3 = vector.load %arg3[%c0_3, %c0_4] : memref<1x64xf32, #tpu.memory_space<vmem>>, vector<1x64xf32>
    %4 = vector.broadcast %3 : vector<1x64xf32> to vector<8x64xf32>
    %5 = arith.addf %2, %4 : vector<8x64xf32>
    %cst_5 = arith.constant 0.000000e+00 : f32
    %6 = vector.broadcast %cst_5 : f32 to vector<8x64xf32>
    %7 = arith.maximumf %5, %6 : vector<8x64xf32>
    %8 = vector.broadcast %3 : vector<1x64xf32> to vector<8x64xf32>
    %9 = arith.subf %8, %2 : vector<8x64xf32>
    %cst_6 = arith.constant 0.000000e+00 : f32
    %10 = vector.broadcast %cst_6 : f32 to vector<8x64xf32>
    %11 = arith.maximumf %9, %10 : vector<8x64xf32>
    %12 = arith.addf %7, %11 : vector<8x64xf32>
    %c0_7 = arith.constant 0 : index
    %c0_8 = arith.constant 0 : index
    %13 = vector.load %arg4[%c0_7, %c0_8] : memref<64x32xf32, #tpu.memory_space<vmem>>, vector<64x32xf32>
    %cst_9 = arith.constant dense<0.000000e+00> : vector<8x32xf32>
    %14 = tpu.matmul %12, %13, %cst_9 {dimension_numbers = #tpu.dot_dimension_numbers<[1], [0], [0], [1], [0, 0, 1, 1], [], []>} : vector<8x64xf32>, vector<64x32xf32>, vector<8x32xf32> -> vector<8x32xf32>
    %c0_10 = arith.constant 0 : index
    %c0_11 = arith.constant 0 : index
    %15 = vector.load %arg5[%c0_10, %c0_11] : memref<1x32xf32, #tpu.memory_space<vmem>>, vector<1x32xf32>
    %16 = vector.broadcast %15 : vector<1x32xf32> to vector<8x32xf32>
    %17 = arith.addf %14, %16 : vector<8x32xf32>
    %c0_12 = arith.constant 0 : index
    %c0_13 = arith.constant 0 : index
    %18 = vector.load %arg6[%c0_12, %c0_13] : memref<8x32xf32, #tpu.memory_space<vmem>>, vector<8x32xf32>
    tpu.vector_store %arg6[%c0_12, %c0_13], %17 {strides = array<i32>} : memref<8x32xf32, #tpu.memory_space<vmem>>, vector<8x32xf32>,
    return
  }
  func.func @transform_0(%arg0: i32) -> (i32, i32) {
    %c0_i32 = arith.constant 0 : i32
    %c0_i32_0 = arith.constant 0 : i32
    return %arg0, %c0_i32 : i32, i32
  }
  func.func @transform_1(%arg0: i32) -> (i32, i32) {
    %c0_i32 = arith.constant 0 : i32
    %c0_i32_0 = arith.constant 0 : i32
    %c0_i32_1 = arith.constant 0 : i32
    return %c0_i32, %c0_i32_0 : i32, i32
  }
  func.func @transform_2(%arg0: i32) -> (i32, i32) {
    %c0_i32 = arith.constant 0 : i32
    %c0_i32_0 = arith.constant 0 : i32
    %c0_i32_1 = arith.constant 0 : i32
    return %c0_i32, %c0_i32_0 : i32, i32
  }
  func.func @transform_3(%arg0: i32) -> (i32, i32) {
    %c0_i32 = arith.constant 0 : i32
    %c0_i32_0 = arith.constant 0 : i32
    %c0_i32_1 = arith.constant 0 : i32
    return %c0_i32, %c0_i32_0 : i32, i32
  }
  func.func @transform_4(%arg0: i32) -> (i32, i32) {
    %c0_i32 = arith.constant 0 : i32
    %c0_i32_0 = arith.constant 0 : i32
    %c0_i32_1 = arith.constant 0 : i32
    return %c0_i32, %c0_i32_0 : i32, i32
  }
  func.func @transform_5(%arg0: i32) -> (i32, i32) {
    %c0_i32 = arith.constant 0 : i32
    %c0_i32_0 = arith.constant 0 : i32
    return %arg0, %c0_i32 : i32, i32
  }
}

</mosaic_0001>

<llo_original>
// kernel: tpu_custom_call.1
$region0: #{tpu_custom_call.1}
  #allocation0 [shape = 'u32[]', space=smem, size = 0x4, offset = 0x4, fixed_abs, tag = 'smem constant byte address 0x4 - core index']
  #allocation1 [shape = 'u32[72,128]{1,0:T(1,128)}', space=vmem, size = 0x9000, scoped, tag = 'internal scratch']
  %s0 = inlined_call_operand.vmem [shape: f32[16,10], index: 0, kind: input, shape index: {}]
  %s1 = inlined_call_operand.vmem [shape: f32[10,64], index: 1, kind: input, shape index: {}]
  %s2 = inlined_call_operand.vmem [shape: f32[1,64], index: 2, kind: input, shape index: {}]
  %s3 = inlined_call_operand.vmem [shape: f32[64,32], index: 3, kind: input, shape index: {}]
  %s4 = inlined_call_operand.vmem [shape: f32[1,32], index: 4, kind: input, shape index: {}]
  %s5 = inlined_call_operand.hbm [shape: f32[16,32], index: 5, kind: output, shape index: {}]
  %s6 = sld [smem:[#allocation0]]
  $region53: #{tpu_custom_call.1} parent=0
    _
  %s8 = ssub.s32 1, %s6
  %s9 = scalar_select 0, %s8, %s6
  $region1: #{tpu_custom_call.1} parent=0
    #allocation2 [shape = 'u8[8192]{0}', space=vmem, size = 0x2000, scoped, tag = 'output window, operand 0']
    #allocation3 [shape = 's32[2]{0}', space=sflag, size = 0x8, scoped, tag = 'scoped memory for tpu_custom_call.1']
    %10 = vsyncpa [#allocation3], 0
    %s11 = scalar_lea.sflag [#allocation3], 1
    %12 = vsyncpa %s11, 0
    loop: start=0, step=1, limit=4
    $region2: #{tpu_custom_call.1} parent=1 // loop_pre_header
      _
    $region3: #{tpu_custom_call.1} parent=1 // loop_header
      %s14 = sphi 0, %s18
      %p15 = scmp.ge.s32.totalorder %s14, 4
      %s24 = sphi 0, %s26
      %s27 = sphi 0, %s24
      %s28 = sphi 0, %s27
      %s44 = sphi 0, %s28
      %s48 = sphi 0, %s48
      %s50 = sphi 0, %s48
      %s51 = sphi 0, %s50
      %s65 = sphi 0, %s51
      %s69 = sphi 0, %s69
      %s71 = sphi 0, %s69
      %s72 = sphi 0, %s71
      %s86 = sphi 0, %s72
      %s90 = sphi 0, %s90
      %s92 = sphi 0, %s90
      %s93 = sphi 0, %s92
      %s107 = sphi 0, %s93
      %s111 = sphi 0, %s111
      %s113 = sphi 0, %s111
      %s114 = sphi 0, %s113
      %s128 = sphi 0, %s114
      %s134 = sphi 0, %s136
      %s137 = sphi 0, %s134
      %s138 = sphi 0, %s137
      %s154 = sphi 0, %s138
    $region4: #{tpu_custom_call.1} parent=1 // loop_header_branch
      %17 = sbr.rel (%p15) target = $region8
    $region5: #{tpu_custom_call.1} parent=1 // loop_body
      %s19 = ssub.s32 %s14, 1
      %s20 = ssub.s32 %s14, 2
      %s21 = sadd.s32 %s14, 1
      %s22 = ssub.s32 %s14, %s21
      %p23 = scmp.eq.s32.totalorder %s22, 0
      %s25 = sadd.s32 %s24, 1
      %s26 = scalar_select %p23, %s24, %s25
      %p29 = pneg %p23
      %p30 = scmp.eq.s32.totalorder %s14, 1
      %p31 = por %p29, %p30
      %p32 = scmp.ne.s32.totalorder %s24, %s27
      %p33 = scmp.eq.s32.totalorder %s14, 0
      %p34 = por %p32, %p33
      %p35 = scmp.ne.s32.totalorder %s24, %s27
      %p36 = scmp.eq.s32.totalorder %s19, 1
      %p37 = por %p35, %p36
      %p38 = scmp.ne.s32.totalorder %s27, %s28
      %p39 = scmp.eq.s32.totalorder %s19, 0
      %p40 = por %p38, %p39
      %p41 = scmp.ne.s32.totalorder %s27, %s28
      %p42 = scmp.eq.s32.totalorder %s20, 1
      %p43 = por %p41, %p42
      %p45 = scmp.ne.s32.totalorder %s28, %s44
      %p46 = scmp.eq.s32.totalorder %s20, 0
      %p47 = por %p45, %p46
      %s49 = sadd.s32 %s48, 1
      %p52 = scmp.eq.s32.totalorder %s14, 1
      %p53 = scmp.ne.s32.totalorder %s48, %s50
      %p54 = scmp.eq.s32.totalorder %s14, 0
      %p55 = por %p53, %p54
      %p56 = scmp.ne.s32.totalorder %s48, %s50
      %p57 = scmp.eq.s32.totalorder %s19, 1
      %p58 = por %p56, %p57
      %p59 = scmp.ne.s32.totalorder %s50, %s51
      %p60 = scmp.eq.s32.totalorder %s19, 0
      %p61 = por %p59, %p60
      %p62 = scmp.ne.s32.totalorder %s50, %s51
      %p63 = scmp.eq.s32.totalorder %s20, 1
      %p64 = por %p62, %p63
      %p66 = scmp.ne.s32.totalorder %s51, %s65
      %p67 = scmp.eq.s32.totalorder %s20, 0
      %p68 = por %p66, %p67
      %s70 = sadd.s32 %s69, 1
      %p73 = scmp.eq.s32.totalorder %s14, 1
      %p74 = scmp.ne.s32.totalorder %s69, %s71
      %p75 = scmp.eq.s32.totalorder %s14, 0
      %p76 = por %p74, %p75
      %p77 = scmp.ne.s32.totalorder %s69, %s71
      %p78 = scmp.eq.s32.totalorder %s19, 1
      %p79 = por %p77, %p78
      %p80 = scmp.ne.s32.totalorder %s71, %s72
      %p81 = scmp.eq.s32.totalorder %s19, 0
      %p82 = por %p80, %p81
      %p83 = scmp.ne.s32.totalorder %s71, %s72
      %p84 = scmp.eq.s32.totalorder %s20, 1
      %p85 = por %p83, %p84
      %p87 = scmp.ne.s32.totalorder %s72, %s86
      %p88 = scmp.eq.s32.totalorder %s20, 0
      %p89 = por %p87, %p88
      %s91 = sadd.s32 %s90, 1
      %p94 = scmp.eq.s32.totalorder %s14, 1
      %p95 = scmp.ne.s32.totalorder %s90, %s92
      %p96 = scmp.eq.s32.totalorder %s14, 0
      %p97 = por %p95, %p96
      %p98 = scmp.ne.s32.totalorder %s90, %s92
      %p99 = scmp.eq.s32.totalorder %s19, 1
      %p100 = por %p98, %p99
      %p101 = scmp.ne.s32.totalorder %s92, %s93
      %p102 = scmp.eq.s32.totalorder %s19, 0
      %p103 = por %p101, %p102
      %p104 = scmp.ne.s32.totalorder %s92, %s93
      %p105 = scmp.eq.s32.totalorder %s20, 1
      %p106 = por %p104, %p105
      %p108 = scmp.ne.s32.totalorder %s93, %s107
      %p109 = scmp.eq.s32.totalorder %s20, 0
      %p110 = por %p108, %p109
      %s112 = sadd.s32 %s111, 1
      %p115 = scmp.eq.s32.totalorder %s14, 1
      %p116 = scmp.ne.s32.totalorder %s111, %s113
      %p117 = scmp.eq.s32.totalorder %s14, 0
      %p118 = por %p116, %p117
      %p119 = scmp.ne.s32.totalorder %s111, %s113
      %p120 = scmp.eq.s32.totalorder %s19, 1
      %p121 = por %p119, %p120
      %p122 = scmp.ne.s32.totalorder %s113, %s114
      %p123 = scmp.eq.s32.totalorder %s19, 0
      %p124 = por %p122, %p123
      %p125 = scmp.ne.s32.totalorder %s113, %s114
      %p126 = scmp.eq.s32.totalorder %s20, 1
      %p127 = por %p125, %p126
      %p129 = scmp.ne.s32.totalorder %s114, %s128
      %p130 = scmp.eq.s32.totalorder %s20, 0
      %p131 = por %p129, %p130
      %s132 = ssub.s32 %s14, %s21
      %p133 = scmp.eq.s32.totalorder %s132, 0
      %s135 = sadd.s32 %s134, 1
      %s136 = scalar_select %p133, %s134, %s135
      %p139 = pneg %p133
      %p140 = scmp.eq.s32.totalorder %s14, 1
      %p141 = por %p139, %p140
      %p142 = scmp.ne.s32.totalorder %s134, %s137
      %p143 = scmp.eq.s32.totalorder %s14, 0
      %p144 = por %p142, %p143
      %p145 = scmp.ne.s32.totalorder %s134, %s137
      %p146 = scmp.eq.s32.totalorder %s19, 1
      %p147 = por %p145, %p146
      %p148 = scmp.ne.s32.totalorder %s137, %s138
      %p149 = scmp.eq.s32.totalorder %s19, 0
      %p150 = por %p148, %p149
      %p151 = scmp.ne.s32.totalorder %s137, %s138
      %p152 = scmp.eq.s32.totalorder %s20, 1
      %p153 = por %p151, %p152
      %p155 = scmp.ne.s32.totalorder %s138, %s154
      %p156 = scmp.eq.s32.totalorder %s20, 0
      %p157 = por %p155, %p156
      %p158 = scmp.le.s32.totalorder 1, %s14
      %p159 = scmp.lt.s32.totalorder %s14, 3
      %p160 = pnand %p158, %p159
      %p161 = pneg %p160
      // Predicated region
      $region9: #{tpu_custom_call.1} parent=5 // pred_check
        _
      $region10: #{tpu_custom_call.1} parent=5 // pred_check_branch
        %163 = sbr.rel (%p160) target = $region12
      $region11: #{tpu_custom_call.1} parent=5 // pred_region
        %s164 = ssub.s32 %s14, 1
        // Predicated region
        $region13: #{tpu_custom_call.1} parent=11 // pred_check
          %p165 = pneg %p61
        $region14: #{tpu_custom_call.1} parent=11 // pred_check_branch
          %167 = sbr.rel (%p165) target = $region16
        $region15: #{tpu_custom_call.1} parent=11 // pred_region
          _
        $region16: #{tpu_custom_call.1} parent=11 // pred_fallthru
          _
        // Predicated region
        $region17: #{tpu_custom_call.1} parent=11 // pred_check
          %p168 = pneg %p82
        $region18: #{tpu_custom_call.1} parent=11 // pred_check_branch
          %170 = sbr.rel (%p168) target = $region20
        $region19: #{tpu_custom_call.1} parent=11 // pred_region
          _
        $region20: #{tpu_custom_call.1} parent=11 // pred_fallthru
          _
        // Predicated region
        $region21: #{tpu_custom_call.1} parent=11 // pred_check
          %p171 = pneg %p103
        $region22: #{tpu_custom_call.1} parent=11 // pred_check_branch
          %173 = sbr.rel (%p171) target = $region24
        $region23: #{tpu_custom_call.1} parent=11 // pred_region
          _
        $region24: #{tpu_custom_call.1} parent=11 // pred_fallthru
          _
        // Predicated region
        $region25: #{tpu_custom_call.1} parent=11 // pred_check
          %p174 = pneg %p124
        $region26: #{tpu_custom_call.1} parent=11 // pred_check_branch
          %176 = sbr.rel (%p174) target = $region28
        $region27: #{tpu_custom_call.1} parent=11 // pred_region
          _
        $region28: #{tpu_custom_call.1} parent=11 // pred_fallthru
          _
      $region12: #{tpu_custom_call.1} parent=5 // pred_fallthru
        _
      %p177 = scmp.lt.s32.totalorder %s14, 2
      // Predicated region
      $region29: #{tpu_custom_call.1} parent=5 // pred_check
        %p178 = pneg %p177
      $region30: #{tpu_custom_call.1} parent=5 // pred_check_branch
        %180 = sbr.rel (%p178) target = $region32
      $region31: #{tpu_custom_call.1} parent=5 // pred_region
        // Predicated region
        $region33: #{tpu_custom_call.1} parent=31 // pred_check
          %p181 = pneg %p34
        $region34: #{tpu_custom_call.1} parent=31 // pred_check_branch
          %183 = sbr.rel (%p181) target = $region36
        $region35: #{tpu_custom_call.1} parent=31 // pred_region
          %p184 = scmp.lt.s32.totalorder %s14, 1
          %s185 = scalar_select %p184, %s14, 1
          %s186 = smul.addr %s185, 8
          %s187 = scalar_lea.vmem %s0, %s186
        $region36: #{tpu_custom_call.1} parent=31 // pred_fallthru
          _
      $region32: #{tpu_custom_call.1} parent=5 // pred_fallthru
        _
      %p188 = scmp.le.s32.totalorder 1, %s14
      %p189 = scmp.lt.s32.totalorder %s14, 3
      %p190 = pnand %p188, %p189
      %p191 = pneg %p190
      // Predicated region
      $region37: #{tpu_custom_call.1} parent=5 // pred_check
        _
      $region38: #{tpu_custom_call.1} parent=5 // pred_check_branch
        %193 = sbr.rel (%p190) target = $region40
      $region39: #{tpu_custom_call.1} parent=5 // pred_region
        %s194 = ssub.s32 %s14, 1
        %p195 = scmp.lt.s32.totalorder %s19, 1
        %s196 = scalar_select %p195, %s19, 1
        %s197 = smul.addr %s196, 8
        %s198 = scalar_lea.vmem %s0, %s197
        %p199 = pneg %p40
        %p200 = pneg %p37
        %p201 = pneg %p61
        %p202 = pneg %p58
        %p203 = pneg %p82
        %p204 = pneg %p79
        %p205 = pneg %p103
        %p206 = pneg %p100
        %p207 = pneg %p124
        %p208 = pneg %p121
        %p209 = pneg %p150
        %p210 = pneg %p147
        %s211 = sand.u32 %s137, 1
        %s212 = scalar_lea.sflag [#allocation3], %s211
        %s213 = sand.u32 %s137, 1
        %s214 = smul.addr %s213, 8
        %s215 = scalar_lea.vmem [#allocation2], %s214
        %p216 = scmp.lt.s32.totalorder %s19, 1
        %s217 = scalar_select %p216, %s19, 1
        %s218 = smul.addr %s217, 8
        %s219 = scalar_lea.vmem %s0, %s218
        %v220 = vld [vmem:[%s219] sm:$0xff]
        %v221 = vld [vmem:[%s1] sm:$0xff]
        %v222 = vld [vmem:[%s1 + $0x8] sm:$0x3]
        %vm223 = vcmask 80896
        %v225 = vsel %vm223, %v220, 0
        %vm227 = vcmask 1041408
        %v229 = vsel %vm227, %v222, 0
        %231 = vmatpush.msra.mxu0 0.0
        %232 = vmatpush.msra.mxu0 0.0
        %233 = vmatpush.msra.mxu0 0.0
        %234 = vmatpush.msra.mxu0 0.0
        %235 = vmatpush.msra.mxu0 0.0
        %236 = vmatpush.msra.mxu0 0.0
        %237 = vmatpush.msra.mxu0 0.0
        %238 = vmatpush.msra.mxu0 0.0
        %239 = vmatpush.msra.mxu0 0.0
        %240 = vmatpush.msra.mxu0 0.0
        %241 = vmatpush.msra.mxu0 0.0
        %242 = vmatpush.msra.mxu0 0.0
        %243 = vmatpush.msra.mxu0 0.0
        %244 = vmatpush.msra.mxu0 0.0
        %245 = vmatpush.msra.mxu0 %v229
        %246 = vmatpush.msra.mxu0 %v221
        %247 = vmatmul.f32.gmra.mxu0 %v225
        %v248 = vpop.f32.mrf.mxu0
        %v249 = vadd.f32 0.0, %v248
        %250 = vdwg.mxu0
        %v251 = vld [vmem:[%s2] sm:$0x1]
        %v253 = vperm.slane %v251, 0
        %v255 = vadd.f32 %v249, %v253
        %v256 = vmax.f32 %v255, 0.0
        %v257 = vsub.f32 %v253, %v249
        %v258 = vmax.f32 %v257, 0.0
        %v259 = vadd.f32 %v256, %v258
        %v260 = vld [vmem:[%s3] sm:$0xff]
        %v261 = vld [vmem:[%s3 + $0x8] sm:$0xff]
        %v262 = vld [vmem:[%s3 + $0x10] sm:$0xff]
        %v263 = vld [vmem:[%s3 + $0x18] sm:$0xff]
        %v264 = vld [vmem:[%s3 + $0x20] sm:$0xff]
        %v265 = vld [vmem:[%s3 + $0x28] sm:$0xff]
        %v266 = vld [vmem:[%s3 + $0x30] sm:$0xff]
        %v267 = vld [vmem:[%s3 + $0x38] sm:$0xff]
        %v268 = vld [vmem:[%s4] sm:$0x1]
        %v270 = vperm.slane %v268, 0
        %vm272 = vcmask 523264
        %v274 = vsel %vm272, %v259, 0
        %276 = vmatpush.msra.mxu0 0.0
        %277 = vmatpush.msra.mxu0 0.0
        %278 = vmatpush.msra.mxu0 0.0
        %279 = vmatpush.msra.mxu0 0.0
        %280 = vmatpush.msra.mxu0 0.0
        %281 = vmatpush.msra.mxu0 0.0
        %282 = vmatpush.msra.mxu0 0.0
        %283 = vmatpush.msra.mxu0 0.0
        %284 = vmatpush.msra.mxu0 %v267
        %285 = vmatpush.msra.mxu0 %v266
        %286 = vmatpush.msra.mxu0 %v265
        %287 = vmatpush.msra.mxu0 %v264
        %288 = vmatpush.msra.mxu0 %v263
        %289 = vmatpush.msra.mxu0 %v262
        %290 = vmatpush.msra.mxu0 %v261
        %291 = vmatpush.msra.mxu0 %v260
        %292 = vmatmul.f32.gmra.mxu0 %v274
        %v293 = vpop.f32.mrf.mxu0
        %v294 = vadd.f32 %v270, %v293
        %295 = vdwg.mxu0
        %vm296 = vcmask 261120
        %297 = vst.msk [vmem:[%s215] sm:$0xff] %vm296, %v294
        %s298 = sand.u32 %s137, 1
        %s299 = scalar_lea.sflag [#allocation3], %s298
        %s300 = sand.u32 %s137, 1
        %s301 = smul.addr %s300, 8
        %s302 = scalar_lea.vmem [#allocation2], %s301
        // Predicated region
        $region41: #{tpu_custom_call.1} parent=39 // pred_check
          %p303 = pneg %p147
        $region42: #{tpu_custom_call.1} parent=39 // pred_check_branch
          %305 = sbr.rel (%p303) target = $region44
        $region43: #{tpu_custom_call.1} parent=39 // pred_region
          %307 = vsyncadd %s299, 0
          %s308 = smul.addr %s19, 8
          %s309 = scalar_lea.hbm %s5, %s308
          %s311 = sshll.u32 %s302, 4
          %s312 = int_to_ptr.vmem [resolvable:$true] %s311
          %s313 = sshll.u32 %s309, 4
          %s314 = int_to_ptr.hbm [resolvable:$true] %s313
          %316 = dma.vmem_to_hbm [thread:$0]  %s312, 128, %s314, %s299
        $region44: #{tpu_custom_call.1} parent=39 // pred_fallthru
          _
      $region40: #{tpu_custom_call.1} parent=5 // pred_fallthru
        _
      %p317 = scmp.le.s32.totalorder 2, %s14
      // Predicated region
      $region45: #{tpu_custom_call.1} parent=5 // pred_check
        %p318 = pneg %p317
      $region46: #{tpu_custom_call.1} parent=5 // pred_check_branch
        %320 = sbr.rel (%p318) target = $region48
      $region47: #{tpu_custom_call.1} parent=5 // pred_region
        %s321 = ssub.s32 %s14, 2
        // Predicated region
        $region49: #{tpu_custom_call.1} parent=47 // pred_check
          %p322 = pneg %p153
        $region50: #{tpu_custom_call.1} parent=47 // pred_check_branch
          %324 = sbr.rel (%p322) target = $region52
        $region51: #{tpu_custom_call.1} parent=47 // pred_region
          %s325 = sand.u32 %s138, 1
          %s326 = scalar_lea.sflag [#allocation3], %s325
          %s327 = sand.u32 %s138, 1
          %s328 = smul.addr %s327, 8
          %s329 = scalar_lea.vmem [#allocation2], %s328
          %331 = dma.done %s326, 128
        $region52: #{tpu_custom_call.1} parent=47 // pred_fallthru
          _
      $region48: #{tpu_custom_call.1} parent=5 // pred_fallthru
        _
    $region6: #{tpu_custom_call.1} parent=1 // loop_footer
      %s18 = sadd.s32 1, %s14
    $region7: #{tpu_custom_call.1} parent=1 // loop_footer_branch
      %13 = sbr.rel target = $region3
    $region8: #{tpu_custom_call.1} parent=1 // loop_exit
      _
    %332 = vsyncpa [#allocation3], 1
    %s333 = scalar_lea.sflag [#allocation3], 1
    %334 = vsyncpa %s333, 1

</llo_original>
